<compile_context>
chip_gen: v6e
topology: v6e:2x2x1
jax: 0.10.0
libtpu: 0.0.40
codegen_flags: <defaults>
</compile_context>

<pallas_src>
import functools

import jax
import jax.numpy as jnp
from jax.experimental import pallas as pl
from jax.experimental.pallas import tpu as pltpu

LANE = 128


def _round_up(x, m):
    return (x + m - 1) // m * m


def _plan_tiles(n):
    """Pick (padded N, TM, TK): MXU/lane aligned, >=2 row blocks when possible (v7x 2 TCs)."""
    if n <= 256:
        t = 128
    elif n <= 2048:
        t = 256
    else:
        t = 512
    np_ = _round_up(n, t)          # pad N to the target tile so tiles divide exactly
    tm = tk = t
    while np_ // tm < 2 and tm > 128:   # keep the parallel row axis >= 2 blocks if we can
        tm //= 2
    return np_, tm, tk


def _vmem_plan(np_, d, tm, tk):
    """(vmem_limit_bytes, e_resident) sized from the actual tiles with headroom for Mosaic."""
    try:
        cap = int(pltpu.get_tpu_info().vmem_capacity_bytes)
    except Exception:  # older jax / info unavailable: assume the smallest generation (v7x 64 MiB)
        cap = 64 * 1024 * 1024
    budget = int(cap * 0.75)            # leave headroom for Mosaic internal scratch (v7x: ~48 MiB)

    e_bytes = 2 * np_ * d * 2           # resident bf16 E (allow for a second buffer)
    e_resident = e_bytes <= budget // 2
    if not e_resident:
        e_bytes = 2 * tk * d * 2        # fallback: streamed (TK, D) slab, double-buffered
    need = (2 * tm * tk * 2             # double-buffered bf16 G tiles
            + e_bytes
            + 2 * tm * d * (4 + 2)      # double-buffered f32 + bf16 output tiles
            + 4 * 1024 * 1024)          # slack for internal scratch
    return min(max(need, 32 * 1024 * 1024), budget), e_resident


def prepare_graph(graph, np_):
    """Pad N->np_ and cast the normalized adjacency to bf16 ONCE (hoisted out of the forward)."""
    n = graph.shape[0]
    g = jnp.zeros((np_, np_), jnp.bfloat16)
    return g.at[:n, :n].set(graph.astype(jnp.bfloat16))


def _layer_matmul_kernel(g_ref, e_ref, out_ref, out_bf16_ref):
    """One LightGCN layer, tiled over (row block i, K block k).

    out (f32) is resident across k and doubles as the accumulator (no scratch);
    out_bf16 is emitted on the last k and feeds the next layer (folds the wrapper cast).
    """
    k = pl.program_id(1)
    tk = g_ref.shape[1]

    @pl.when(k == 0)
    def _init():
        out_ref[...] = jnp.zeros_like(out_ref)

    if e_ref.shape[0] == tk:
        # Streamed fallback: e_ref is already the (TK, D) slab for this k.
        e_blk = e_ref[...]
    else:
        # VMEM-resident E: slice the K window in-kernel (sublane-aligned, no extra DMA).
        e_blk = e_ref[pl.ds(pl.multiple_of(k * tk, tk), tk), :]

    out_ref[...] += jnp.dot(g_ref[...], e_blk, preferred_element_type=jnp.float32)

    @pl.when(k == pl.num_programs(1) - 1)
    def _finalize():
        out_bf16_ref[...] = out_ref[...].astype(jnp.bfloat16)


def _lightgcn_layer(g_bf16, e_bf16, *, tm, tk, vmem_limit, e_resident):
    """(E_next_f32, E_next_bf16) = G (bf16) @ E (bf16), f32 accumulate, tiled & pipelined."""
    np_ = g_bf16.shape[0]
    d = e_bf16.shape[1]
    grid = (np_ // tm, np_ // tk)

    if e_resident:
        e_spec = pl.BlockSpec((np_, d), lambda i, k: (0, 0))   # DMA'd once, stays in VMEM
    else:
        e_spec = pl.BlockSpec((tk, d), lambda i, k: (k, 0))    # streamed per K step

    return pl.pallas_call(
        _layer_matmul_kernel,
        out_shape=(jax.ShapeDtypeStruct((np_, d), jnp.float32),
                   jax.ShapeDtypeStruct((np_, d), jnp.bfloat16)),
        grid_spec=pltpu.PrefetchScalarGridSpec(
            num_scalar_prefetch=0,
            grid=grid,
            in_specs=[
                pl.BlockSpec((tm, tk), lambda i, k: (i, k)),   # stream G tiles (dominant bytes)
                e_spec,
            ],
            out_specs=[
                pl.BlockSpec((tm, d), lambda i, k: (i, 0)),    # f32 layer output / accumulator
                pl.BlockSpec((tm, d), lambda i, k: (i, 0)),    # bf16 next-layer input
            ],
        ),
        compiler_params=pltpu.CompilerParams(
            dimension_semantics=("parallel", "arbitrary"),
            vmem_limit_bytes=int(vmem_limit),
        ),
    )(g_bf16, e_bf16)


def lightgcn_propagate(g_bf16, all_emb, n_layers, *, tm, tk):
    """LightGCN.computer(): n_layers of E <- G @ E, mean over the (n_layers+1) layer embeddings."""
    np_ = g_bf16.shape[0]
    n, d = all_emb.shape
    vmem_limit, e_resident = _vmem_plan(np_, d, tm, tk)

    e0 = jnp.zeros((np_, d), jnp.float32).at[:n, :].set(all_emb)
    acc = e0                              # layer-0 term of the mean
    cur_bf16 = e0.astype(jnp.bfloat16)
    for _ in range(n_layers):
        cur_f32, cur_bf16 = _lightgcn_layer(
            g_bf16, cur_bf16, tm=tm, tk=tk, vmem_limit=vmem_limit, e_resident=e_resident)
        acc = acc + cur_f32               # O(N*D) running sum: tiny vs the O(N^2) G stream
    light_out = acc * (1.0 / float(n_layers + 1))
    return light_out[:n, :]


def lightgcn_forward(g_bf16, user_emb, item_emb, users, items, *, n_layers, tm, tk):
    """Equivalent of LightGCN.forward(users, items); g_bf16 is the pre-padded bf16 adjacency."""
    num_users = user_emb.shape[0]
    all_emb = jnp.concatenate([user_emb, item_emb], axis=0)
    light_out = lightgcn_propagate(g_bf16, all_emb, n_layers, tm=tm, tk=tk)
    all_users = light_out[:num_users]
    all_items = light_out[num_users:]
    users_emb = all_users[users]
    items_emb = all_items[items]
    # Tiny (B, D) gather + mul + reduce: left to XLA fusion (per perf review).
    return jnp.sum(users_emb * items_emb, axis=1)


def _reference_forward(graph, user_emb, item_emb, users, items, n_layers, *, quantize):
    """Pure-JAX reference.  quantize=True mirrors the kernel's bf16 MXU inputs / f32 accumulate."""
    num_users = user_emb.shape[0]
    all_emb = jnp.concatenate([user_emb, item_emb], axis=0)
    g = graph.astype(jnp.bfloat16).astype(jnp.float32) if quantize else graph
    embs = [all_emb]
    e = all_emb
    for _ in range(n_layers):
        e_in = e.astype(jnp.bfloat16).astype(jnp.float32) if quantize else e
        e = jnp.dot(g, e_in)
        embs.append(e)
    light_out = jnp.mean(jnp.stack(embs, axis=1), axis=1)
    all_users = light_out[:num_users]
    all_items = light_out[num_users:]
    return jnp.sum(all_users[users] * all_items[items], axis=1)


if __name__ == "__main__":
    num_users, num_items, latent_dim = 48, 80, 32
    n_layers = 3
    batch = 8
    N = num_users + num_items  # 128

    key = jax.random.PRNGKey(0)
    k_u, k_i, k_r = jax.random.split(key, 3)

    # nn.init.normal_(..., std=0.1) equivalents
    user_emb = 0.1 * jax.random.normal(k_u, (num_users, latent_dim), dtype=jnp.float32)
    item_emb = 0.1 * jax.random.normal(k_i, (num_items, latent_dim), dtype=jnp.float32)

    # Deterministic synthetic normalized bipartite adjacency (dataset.getSparseGraph() stand-in).
    R = (jax.random.uniform(k_r, (num_users, num_items)) < 0.15).astype(jnp.float32)
    A = jnp.zeros((N, N), dtype=jnp.float32)
    A = A.at[:num_users, num_users:].set(R)
    A = A.at[num_users:, :num_users].set(R.T)
    deg = A.sum(axis=1)
    d_inv_sqrt = jnp.where(deg > 0, deg ** -0.5, 0.0)
    graph = d_inv_sqrt[:, None] * A * d_inv_sqrt[None, :]

    users = jnp.arange(batch, dtype=jnp.int32) % num_users
    items = (jnp.arange(batch, dtype=jnp.int32) * 7) % num_items

    # Tile plan + one-time graph prep (hoisted out of the jitted forward).
    np_pad, tm, tk = _plan_tiles(N)
    g_bf16 = jax.block_until_ready(prepare_graph(graph, np_pad))

    fwd = jax.jit(functools.partial(lightgcn_forward, n_layers=n_layers, tm=tm, tk=tk))
    gamma = jax.block_until_ready(fwd(g_bf16, user_emb, item_emb, users, items))
    assert gamma.shape == (batch,)

    # Tight check vs a reference that mirrors the bf16-input / f32-accumulate numerics.
    gamma_ref_q = _reference_forward(graph, user_emb, item_emb, users, items,
                                     n_layers, quantize=True)
    assert jnp.allclose(gamma, gamma_ref_q, rtol=1e-4, atol=1e-4), (gamma, gamma_ref_q)

    # Loose sanity check vs the pure-f32 module semantics (bf16 G/E quantization error only).
    gamma_ref_f32 = _reference_forward(graph, user_emb, item_emb, users, items,
                                       n_layers, quantize=False)
    assert jnp.allclose(gamma, gamma_ref_f32, rtol=5e-2, atol=1e-2), (gamma, gamma_ref_f32)

    print("KERNEL_OK")
</pallas_src>

<mosaic_0001>
module attributes {stable_mosaic.version = 11 : i64} {
  func.func @_layer_matmul_kernel(%arg0: i32, %arg1: i32, %arg2: memref<128x128xbf16, #tpu.memory_space<vmem>>, %arg3: memref<128x32xbf16, #tpu.memory_space<vmem>>, %arg4: memref<128x32xf32, #tpu.memory_space<vmem>>, %arg5: memref<128x32xbf16, #tpu.memory_space<vmem>>) attributes {dimension_semantics = [#tpu.dimension_semantics<parallel>, #tpu.dimension_semantics<arbitrary>], iteration_bounds = array<i64: 1, 1>, scalar_prefetch = 0 : i64, scratch_operands = 0 : i64, tpu.core_type = #tpu.core_type<tc>, window_params = [{transform_indices = @transform_0, window_bounds = array<i64: 128, 128>}, {pipeline_mode = #tpu.pipeline_mode<synchronous>, transform_indices = @transform_1, window_bounds = array<i64: 128, 32>}, {transform_indices = @transform_2, window_bounds = array<i64: 128, 32>}, {transform_indices = @transform_3, window_bounds = array<i64: 128, 32>}]} {
    %c0_i32 = arith.constant 0 : i32
    %0 = arith.cmpi eq, %arg1, %c0_i32 : i32
    %1 = arith.extui %0 : i1 to i32
    %c0_i32_0 = arith.constant 0 : i32
    %2 = arith.cmpi ne, %1, %c0_i32_0 : i32
    scf.if %2 {
      %cst_10 = arith.constant 0.000000e+00 : f32
      %12 = vector.broadcast %cst_10 : f32 to vector<128x32xf32>
      %c0_11 = arith.constant 0 : index
      %c0_12 = arith.constant 0 : index
      %13 = vector.load %arg4[%c0_11, %c0_12] : memref<128x32xf32, #tpu.memory_space<vmem>>, vector<128x32xf32>
      tpu.vector_store %arg4[%c0_11, %c0_12], %12 {strides = array<i32>} : memref<128x32xf32, #tpu.memory_space<vmem>>, vector<128x32xf32>,
    } else {
    }
    %c0 = arith.constant 0 : index
    %c0_1 = arith.constant 0 : index
    %3 = vector.load %arg3[%c0, %c0_1] : memref<128x32xbf16, #tpu.memory_space<vmem>>, vector<128x32xbf16>
    %c0_2 = arith.constant 0 : index
    %c0_3 = arith.constant 0 : index
    %4 = vector.load %arg4[%c0_2, %c0_3] : memref<128x32xf32, #tpu.memory_space<vmem>>, vector<128x32xf32>
    %c0_4 = arith.constant 0 : index
    %c0_5 = arith.constant 0 : index
    %5 = vector.load %arg2[%c0_4, %c0_5] : memref<128x128xbf16, #tpu.memory_space<vmem>>, vector<128x128xbf16>
    %cst = arith.constant dense<0.000000e+00> : vector<128x32xf32>
    %6 = tpu.matmul %5, %3, %cst {dimension_numbers = #tpu.dot_dimension_numbers<[1], [0], [0], [1], [0, 0, 1, 1], [], []>} : vector<128x128xbf16>, vector<128x32xbf16>, vector<128x32xf32> -> vector<128x32xf32>
    %7 = arith.addf %4, %6 : vector<128x32xf32>
    %c0_6 = arith.constant 0 : index
    %c0_7 = arith.constant 0 : index
    %8 = vector.load %arg4[%c0_6, %c0_7] : memref<128x32xf32, #tpu.memory_space<vmem>>, vector<128x32xf32>
    tpu.vector_store %arg4[%c0_6, %c0_7], %7 {strides = array<i32>} : memref<128x32xf32, #tpu.memory_space<vmem>>, vector<128x32xf32>,
    %c0_i32_8 = arith.constant 0 : i32
    %9 = arith.cmpi eq, %arg1, %c0_i32_8 : i32
    %10 = arith.extui %9 : i1 to i32
    %c0_i32_9 = arith.constant 0 : i32
    %11 = arith.cmpi ne, %10, %c0_i32_9 : i32
    scf.if %11 {
      %c0_10 = arith.constant 0 : index
      %c0_11 = arith.constant 0 : index
      %12 = vector.load %arg4[%c0_10, %c0_11] : memref<128x32xf32, #tpu.memory_space<vmem>>, vector<128x32xf32>
      %13 = arith.truncf %12 : vector<128x32xf32> to vector<128x32xbf16>
      %c0_12 = arith.constant 0 : index
      %c0_13 = arith.constant 0 : index
      %14 = vector.load %arg5[%c0_12, %c0_13] : memref<128x32xbf16, #tpu.memory_space<vmem>>, vector<128x32xbf16>
      tpu.vector_store %arg5[%c0_12, %c0_13], %13 {strides = array<i32>} : memref<128x32xbf16, #tpu.memory_space<vmem>>, vector<128x32xbf16>,
    } else {
    }
    return
  }
  func.func @transform_0(%arg0: i32, %arg1: i32) -> (i32, i32) {
    %c0_i32 = arith.constant 0 : i32
    return %arg0, %arg1 : i32, i32
  }
  func.func @transform_1(%arg0: i32, %arg1: i32) -> (i32, i32) {
    %c0_i32 = arith.constant 0 : i32
    %c0_i32_0 = arith.constant 0 : i32
    %c0_i32_1 = arith.constant 0 : i32
    return %c0_i32, %c0_i32_0 : i32, i32
  }
  func.func @transform_2(%arg0: i32, %arg1: i32) -> (i32, i32) {
    %c0_i32 = arith.constant 0 : i32
    %c0_i32_0 = arith.constant 0 : i32
    return %arg0, %c0_i32 : i32, i32
  }
  func.func @transform_3(%arg0: i32, %arg1: i32) -> (i32, i32) {
    %c0_i32 = arith.constant 0 : i32
    %c0_i32_0 = arith.constant 0 : i32
    return %arg0, %c0_i32 : i32, i32
  }
}

module attributes {stable_mosaic.version = 11 : i64} {
  func.func @_layer_matmul_kernel(%arg0: i32, %arg1: i32, %arg2: memref<128x128xbf16, #tpu.memory_space<vmem>>, %arg3: memref<128x32xbf16, #tpu.memory_space<vmem>>, %arg4: memref<128x32xf32, #tpu.memory_space<vmem>>, %arg5: memref<128x32xbf16, #tpu.memory_space<vmem>>) attributes {dimension_semantics = [#tpu.dimension_semantics<parallel>, #tpu.dimension_semantics<arbitrary>], iteration_bounds = array<i64: 1, 1>, scalar_prefetch = 0 : i64, scratch_operands = 0 : i64, tpu.core_type = #tpu.core_type<tc>, window_params = [{transform_indices = @transform_0, window_bounds = array<i64: 128, 128>}, {pipeline_mode = #tpu.pipeline_mode<synchronous>, transform_indices = @transform_1, window_bounds = array<i64: 128, 32>}, {transform_indices = @transform_2, window_bounds = array<i64: 128, 32>}, {transform_indices = @transform_3, window_bounds = array<i64: 128, 32>}]} {
    %c0_i32 = arith.constant 0 : i32
    %0 = arith.cmpi eq, %arg1, %c0_i32 : i32
    %1 = arith.extui %0 : i1 to i32
    %c0_i32_0 = arith.constant 0 : i32
    %2 = arith.cmpi ne, %1, %c0_i32_0 : i32
    scf.if %2 {
      %cst_10 = arith.constant 0.000000e+00 : f32
      %12 = vector.broadcast %cst_10 : f32 to vector<128x32xf32>
      %c0_11 = arith.constant 0 : index
      %c0_12 = arith.constant 0 : index
      %13 = vector.load %arg4[%c0_11, %c0_12] : memref<128x32xf32, #tpu.memory_space<vmem>>, vector<128x32xf32>
      tpu.vector_store %arg4[%c0_11, %c0_12], %12 {strides = array<i32>} : memref<128x32xf32, #tpu.memory_space<vmem>>, vector<128x32xf32>,
    } else {
    }
    %c0 = arith.constant 0 : index
    %c0_1 = arith.constant 0 : index
    %3 = vector.load %arg3[%c0, %c0_1] : memref<128x32xbf16, #tpu.memory_space<vmem>>, vector<128x32xbf16>
    %c0_2 = arith.constant 0 : index
    %c0_3 = arith.constant 0 : index
    %4 = vector.load %arg4[%c0_2, %c0_3] : memref<128x32xf32, #tpu.memory_space<vmem>>, vector<128x32xf32>
    %c0_4 = arith.constant 0 : index
    %c0_5 = arith.constant 0 : index
    %5 = vector.load %arg2[%c0_4, %c0_5] : memref<128x128xbf16, #tpu.memory_space<vmem>>, vector<128x128xbf16>
    %cst = arith.constant dense<0.000000e+00> : vector<128x32xf32>
    %6 = tpu.matmul %5, %3, %cst {dimension_numbers = #tpu.dot_dimension_numbers<[1], [0], [0], [1], [0, 0, 1, 1], [], []>} : vector<128x128xbf16>, vector<128x32xbf16>, vector<128x32xf32> -> vector<128x32xf32>
    %7 = arith.addf %4, %6 : vector<128x32xf32>
    %c0_6 = arith.constant 0 : index
    %c0_7 = arith.constant 0 : index
    %8 = vector.load %arg4[%c0_6, %c0_7] : memref<128x32xf32, #tpu.memory_space<vmem>>, vector<128x32xf32>
    tpu.vector_store %arg4[%c0_6, %c0_7], %7 {strides = array<i32>} : memref<128x32xf32, #tpu.memory_space<vmem>>, vector<128x32xf32>,
    %c0_i32_8 = arith.constant 0 : i32
    %9 = arith.cmpi eq, %arg1, %c0_i32_8 : i32
    %10 = arith.extui %9 : i1 to i32
    %c0_i32_9 = arith.constant 0 : i32
    %11 = arith.cmpi ne, %10, %c0_i32_9 : i32
    scf.if %11 {
      %c0_10 = arith.constant 0 : index
      %c0_11 = arith.constant 0 : index
      %12 = vector.load %arg4[%c0_10, %c0_11] : memref<128x32xf32, #tpu.memory_space<vmem>>, vector<128x32xf32>
      %13 = arith.truncf %12 : vector<128x32xf32> to vector<128x32xbf16>
      %c0_12 = arith.constant 0 : index
      %c0_13 = arith.constant 0 : index
      %14 = vector.load %arg5[%c0_12, %c0_13] : memref<128x32xbf16, #tpu.memory_space<vmem>>, vector<128x32xbf16>
      tpu.vector_store %arg5[%c0_12, %c0_13], %13 {strides = array<i32>} : memref<128x32xbf16, #tpu.memory_space<vmem>>, vector<128x32xbf16>,
    } else {
    }
    return
  }
  func.func @transform_0(%arg0: i32, %arg1: i32) -> (i32, i32) {
    %c0_i32 = arith.constant 0 : i32
    return %arg0, %arg1 : i32, i32
  }
  func.func @transform_1(%arg0: i32, %arg1: i32) -> (i32, i32) {
    %c0_i32 = arith.constant 0 : i32
    %c0_i32_0 = arith.constant 0 : i32
    %c0_i32_1 = arith.constant 0 : i32
    return %c0_i32, %c0_i32_0 : i32, i32
  }
  func.func @transform_2(%arg0: i32, %arg1: i32) -> (i32, i32) {
    %c0_i32 = arith.constant 0 : i32
    %c0_i32_0 = arith.constant 0 : i32
    return %arg0, %c0_i32 : i32, i32
  }
  func.func @transform_3(%arg0: i32, %arg1: i32) -> (i32, i32) {
    %c0_i32 = arith.constant 0 : i32
    %c0_i32_0 = arith.constant 0 : i32
    return %arg0, %c0_i32 : i32, i32
  }
}

</mosaic_0001>

<llo_original>
// kernel: lightgcn_forward.5
$region0: #{lightgcn_forward.5}
  #allocation0 [shape = 'u32[]', space=smem, size = 0x4, offset = 0x4, fixed_abs, tag = 'smem constant byte address 0x4 - core index']
  #allocation1 [shape = 'u32[144,128]{1,0:T(1,128)}', space=vmem, size = 0x12000, scoped, tag = 'internal scratch']
  %s0 = inlined_call_operand.vmem [shape: bf16[128,128], index: 0, kind: input, shape index: {}]
  %s1 = inlined_call_operand.vmem [shape: bf16[128,32], index: 1, kind: input, shape index: {}]
  %s2 = inlined_call_operand.vmem [shape: f32[128,32], index: 2, kind: output, shape index: {0}]
  %s3 = inlined_call_operand.hbm [shape: bf16[128,32], index: 3, kind: output, shape index: {1}]
  %4 = xla_tuple %s2, %s3
  %s5 = sld [smem:[#allocation0]]
  $region34: #{lightgcn_forward.5} parent=0
    _
  %s7 = ssub.s32 1, %s5
  %s8 = scalar_select 0, %s7, %s5
  $region1: #{lightgcn_forward.5} parent=0
    #allocation2 [shape = 'u8[32768]{0}', space=vmem, size = 0x8000, scoped, tag = 'output window, operand 1, single buffered']
    #allocation3 [shape = 's32[1]{0}', space=sflag, size = 0x4, scoped, tag = 'scoped memory for lightgcn_forward.5']
    %9 = vsyncpa [#allocation3], 0
    // Predicated region
    $region2: #{lightgcn_forward.5} parent=1 // pred_check
      _
    $region3: #{lightgcn_forward.5} parent=1 // pred_check_branch
      %11 = sbr.rel (0) target = $region5
    $region4: #{lightgcn_forward.5} parent=1 // pred_region
      _
    $region5: #{lightgcn_forward.5} parent=1 // pred_fallthru
      _
    // Predicated region
    $region6: #{lightgcn_forward.5} parent=1 // pred_check
      _
    $region7: #{lightgcn_forward.5} parent=1 // pred_check_branch
      %13 = sbr.rel (0) target = $region9
    $region8: #{lightgcn_forward.5} parent=1 // pred_region
      _
    $region9: #{lightgcn_forward.5} parent=1 // pred_fallthru
      _
    %p15 = scmp.eq.s32.totalorder 0, 0
    // Predicated region
    $region10: #{lightgcn_forward.5} parent=1 // pred_check
      %p16 = pneg %p15
    $region11: #{lightgcn_forward.5} parent=1 // pred_check_branch
      %18 = sbr.rel (%p16) target = $region13
    $region12: #{lightgcn_forward.5} parent=1 // pred_region
      %vm19 = vcmask 261120
      %20 = vst.msk [vmem:[%s2] sm:$0xff] %vm19, 0.0
      %21 = vst.msk [vmem:[%s2 + $0x8] sm:$0xff] %vm19, 0.0
      %22 = vst.msk [vmem:[%s2 + $0x10] sm:$0xff] %vm19, 0.0
      %23 = vst.msk [vmem:[%s2 + $0x18] sm:$0xff] %vm19, 0.0
      %24 = vst.msk [vmem:[%s2 + $0x20] sm:$0xff] %vm19, 0.0
      %25 = vst.msk [vmem:[%s2 + $0x28] sm:$0xff] %vm19, 0.0
      %26 = vst.msk [vmem:[%s2 + $0x30] sm:$0xff] %vm19, 0.0
      %27 = vst.msk [vmem:[%s2 + $0x38] sm:$0xff] %vm19, 0.0
      %28 = vst.msk [vmem:[%s2 + $0x40] sm:$0xff] %vm19, 0.0
      %29 = vst.msk [vmem:[%s2 + $0x48] sm:$0xff] %vm19, 0.0
      %30 = vst.msk [vmem:[%s2 + $0x50] sm:$0xff] %vm19, 0.0
      %31 = vst.msk [vmem:[%s2 + $0x58] sm:$0xff] %vm19, 0.0
      %32 = vst.msk [vmem:[%s2 + $0x60] sm:$0xff] %vm19, 0.0
      %33 = vst.msk [vmem:[%s2 + $0x68] sm:$0xff] %vm19, 0.0
      %34 = vst.msk [vmem:[%s2 + $0x70] sm:$0xff] %vm19, 0.0
      %35 = vst.msk [vmem:[%s2 + $0x78] sm:$0xff] %vm19, 0.0
    $region13: #{lightgcn_forward.5} parent=1 // pred_fallthru
      _
    %v36 = vld [vmem:[%s1] sm:$0xf]
    %v37 = vld [vmem:[%s1 + $0x4] sm:$0xf]
    %v38 = vld [vmem:[%s1 + $0x8] sm:$0xf]
    %v39 = vld [vmem:[%s1 + $0xc] sm:$0xf]
    %v40 = vld [vmem:[%s1 + $0x10] sm:$0xf]
    %v41 = vld [vmem:[%s1 + $0x14] sm:$0xf]
    %v42 = vld [vmem:[%s1 + $0x18] sm:$0xf]
    %v43 = vld [vmem:[%s1 + $0x1c] sm:$0xf]
    %v44 = vld [vmem:[%s1 + $0x20] sm:$0xf]
    %v45 = vld [vmem:[%s1 + $0x24] sm:$0xf]
    %v46 = vld [vmem:[%s1 + $0x28] sm:$0xf]
    %v47 = vld [vmem:[%s1 + $0x2c] sm:$0xf]
    %v48 = vld [vmem:[%s1 + $0x30] sm:$0xf]
    %v49 = vld [vmem:[%s1 + $0x34] sm:$0xf]
    %v50 = vld [vmem:[%s1 + $0x38] sm:$0xf]
    %v51 = vld [vmem:[%s1 + $0x3c] sm:$0xf]
    %v52 = vld [vmem:[%s2] sm:$0xff]
    %v53 = vld [vmem:[%s2 + $0x8] sm:$0xff]
    %v54 = vld [vmem:[%s2 + $0x10] sm:$0xff]
    %v55 = vld [vmem:[%s2 + $0x18] sm:$0xff]
    %v56 = vld [vmem:[%s2 + $0x20] sm:$0xff]
    %v57 = vld [vmem:[%s2 + $0x28] sm:$0xff]
    %v58 = vld [vmem:[%s2 + $0x30] sm:$0xff]
    %v59 = vld [vmem:[%s2 + $0x38] sm:$0xff]
    %v60 = vld [vmem:[%s2 + $0x40] sm:$0xff]
    %v61 = vld [vmem:[%s2 + $0x48] sm:$0xff]
    %v62 = vld [vmem:[%s2 + $0x50] sm:$0xff]
    %v63 = vld [vmem:[%s2 + $0x58] sm:$0xff]
    %v64 = vld [vmem:[%s2 + $0x60] sm:$0xff]
    %v65 = vld [vmem:[%s2 + $0x68] sm:$0xff]
    %v66 = vld [vmem:[%s2 + $0x70] sm:$0xff]
    %v67 = vld [vmem:[%s2 + $0x78] sm:$0xff]
    %v68 = vld [vmem:[%s0] sm:$0xf]
    %v69 = vld [vmem:[%s0 + $0x4] sm:$0xf]
    %v70 = vld [vmem:[%s0 + $0x8] sm:$0xf]
    %v71 = vld [vmem:[%s0 + $0xc] sm:$0xf]
    %v72 = vld [vmem:[%s0 + $0x10] sm:$0xf]
    %v73 = vld [vmem:[%s0 + $0x14] sm:$0xf]
    %v74 = vld [vmem:[%s0 + $0x18] sm:$0xf]
    %v75 = vld [vmem:[%s0 + $0x1c] sm:$0xf]
    %v76 = vld [vmem:[%s0 + $0x20] sm:$0xf]
    %v77 = vld [vmem:[%s0 + $0x24] sm:$0xf]
    %v78 = vld [vmem:[%s0 + $0x28] sm:$0xf]
    %v79 = vld [vmem:[%s0 + $0x2c] sm:$0xf]
    %v80 = vld [vmem:[%s0 + $0x30] sm:$0xf]
    %v81 = vld [vmem:[%s0 + $0x34] sm:$0xf]
    %v82 = vld [vmem:[%s0 + $0x38] sm:$0xf]
    %v83 = vld [vmem:[%s0 + $0x3c] sm:$0xf]
    %v100 = vunpack.c.l.b16 %v68
    %v101 = vunpack.c.l.b16 %v69
    %v102 = vunpack.c.l.b16 %v70
    %v103 = vunpack.c.l.b16 %v71
    %v104 = vunpack.c.l.b16 %v72
    %v105 = vunpack.c.l.b16 %v73
    %v106 = vunpack.c.l.b16 %v74
    %v107 = vunpack.c.l.b16 %v75
    %v108 = vunpack.c.l.b16 %v76
    %v109 = vunpack.c.l.b16 %v77
    %v110 = vunpack.c.l.b16 %v78
    %v111 = vunpack.c.l.b16 %v79
    %v112 = vunpack.c.l.b16 %v80
    %v113 = vunpack.c.l.b16 %v81
    %v114 = vunpack.c.l.b16 %v82
    %v115 = vunpack.c.l.b16 %v83
    %v116 = vpack.c.b16 %v101, %v100
    %v117 = vpack.c.b16 %v103, %v102
    %v118 = vpack.c.b16 %v105, %v104
    %v119 = vpack.c.b16 %v107, %v106
    %v120 = vpack.c.b16 %v109, %v108
    %v121 = vpack.c.b16 %v111, %v110
    %v122 = vpack.c.b16 %v113, %v112
    %v123 = vpack.c.b16 %v115, %v114
    %v148 = vunpack.c.l.b16 %v36
    %v149 = vunpack.c.l.b16 %v37
    %v150 = vunpack.c.l.b16 %v38
    %v151 = vunpack.c.l.b16 %v39
    %v152 = vunpack.c.l.b16 %v40
    %v153 = vunpack.c.l.b16 %v41
    %v154 = vunpack.c.l.b16 %v42
    %v155 = vunpack.c.l.b16 %v43
    %v156 = vunpack.c.l.b16 %v44
    %v157 = vunpack.c.l.b16 %v45
    %v158 = vunpack.c.l.b16 %v46
    %v159 = vunpack.c.l.b16 %v47
    %v160 = vunpack.c.l.b16 %v48
    %v161 = vunpack.c.l.b16 %v49
    %v162 = vunpack.c.l.b16 %v50
    %v163 = vunpack.c.l.b16 %v51
    %v164 = vpack.c.b16 %v149, %v148
    %v165 = vpack.c.b16 %v151, %v150
    %v166 = vpack.c.b16 %v153, %v152
    %v167 = vpack.c.b16 %v155, %v154
    %v168 = vpack.c.b16 %v157, %v156
    %v169 = vpack.c.b16 %v159, %v158
    %v170 = vpack.c.b16 %v161, %v160
    %v171 = vpack.c.b16 %v163, %v162
    %180 = vmatprep.subr.bf16.mxu0 0
    %181 = vmatpush1.bf16.msra.mxu0 %v171
    %182 = vmatprep.subr.bf16.mxu0 0
    %183 = vmatpush1.bf16.msra.mxu0 %v170
    %184 = vmatprep.subr.bf16.mxu0 0
    %185 = vmatpush1.bf16.msra.mxu0 %v169
    %186 = vmatprep.subr.bf16.mxu0 0
    %187 = vmatpush1.bf16.msra.mxu0 %v168
    %188 = vmatprep.subr.bf16.mxu0 0
    %189 = vmatpush1.bf16.msra.mxu0 %v167
    %190 = vmatprep.subr.bf16.mxu0 0
    %191 = vmatpush1.bf16.msra.mxu0 %v166
    %192 = vmatprep.subr.bf16.mxu0 0
    %193 = vmatpush1.bf16.msra.mxu0 %v165
    %194 = vmatprep.subr.bf16.mxu0 0
    %195 = vmatpush1.bf16.msra.mxu0 %v164
    %196 = vmatprep.subr.bf16.mxu0 0
    %197 = vmatpush2.bf16.msra.mxu0 0
    %198 = vmatprep.subr.bf16.mxu0 0
    %199 = vmatpush2.bf16.msra.mxu0 0
    %200 = vmatprep.subr.bf16.mxu0 0
    %201 = vmatpush2.bf16.msra.mxu0 0
    %202 = vmatprep.subr.bf16.mxu0 0
    %203 = vmatpush2.bf16.msra.mxu0 0
    %204 = vmatprep.subr.bf16.mxu0 0
    %205 = vmatpush2.bf16.msra.mxu0 0
    %206 = vmatprep.subr.bf16.mxu0 0
    %207 = vmatpush2.bf16.msra.mxu0 0
    %208 = vmatprep.subr.bf16.mxu0 0
    %209 = vmatpush2.bf16.msra.mxu0 0
    %210 = vmatprep.subr.bf16.mxu0 0
    %211 = vmatpush2.bf16.msra.mxu0 0
    %212 = vmatprep.mubr.bf16.mxu0 0
    %213 = vmatmul.mubr.bf16.gmra.mxu0 %v116
    %v214 = vpop.f32.mrf.mxu0
    %v215 = vadd.f32 0.0, %v214
    %v216 = vpop.f32.mrf.mxu0
    %v217 = vpop.f32.mrf.mxu0
    %v218 = vadd.f32 0.0, %v217
    %v219 = vpop.f32.mrf.mxu0
    %220 = vmatprep.mubr.bf16.mxu0 0
    %221 = vmatmul.mubr.bf16.gmra.mxu0 %v117
    %v222 = vpop.f32.mrf.mxu0
    %v223 = vadd.f32 0.0, %v222
    %v224 = vpop.f32.mrf.mxu0
    %v225 = vpop.f32.mrf.mxu0
    %v226 = vadd.f32 0.0, %v225
    %v227 = vpop.f32.mrf.mxu0
    %228 = vmatprep.mubr.bf16.mxu0 0
    %229 = vmatmul.mubr.bf16.gmra.mxu0 %v118
    %v230 = vpop.f32.mrf.mxu0
    %v231 = vadd.f32 0.0, %v230
    %v232 = vpop.f32.mrf.mxu0
    %v233 = vpop.f32.mrf.mxu0
    %v234 = vadd.f32 0.0, %v233
    %v235 = vpop.f32.mrf.mxu0
    %236 = vmatprep.mubr.bf16.mxu0 0
    %237 = vmatmul.mubr.bf16.gmra.mxu0 %v119
    %v238 = vpop.f32.mrf.mxu0
    %v239 = vadd.f32 0.0, %v238
    %v240 = vpop.f32.mrf.mxu0
    %v241 = vpop.f32.mrf.mxu0
    %v242 = vadd.f32 0.0, %v241
    %v243 = vpop.f32.mrf.mxu0
    %244 = vmatprep.mubr.bf16.mxu0 0
    %245 = vmatmul.mubr.bf16.gmra.mxu0 %v120
    %v246 = vpop.f32.mrf.mxu0
    %v247 = vadd.f32 0.0, %v246
    %v248 = vpop.f32.mrf.mxu0
    %v249 = vpop.f32.mrf.mxu0
    %v250 = vadd.f32 0.0, %v249
    %v251 = vpop.f32.mrf.mxu0
    %252 = vmatprep.mubr.bf16.mxu0 0
    %253 = vmatmul.mubr.bf16.gmra.mxu0 %v121
    %v254 = vpop.f32.mrf.mxu0
    %v255 = vadd.f32 0.0, %v254
    %v256 = vpop.f32.mrf.mxu0
    %v257 = vpop.f32.mrf.mxu0
    %v258 = vadd.f32 0.0, %v257
    %v259 = vpop.f32.mrf.mxu0
    %260 = vmatprep.mubr.bf16.mxu0 0
    %261 = vmatmul.mubr.bf16.gmra.mxu0 %v122
    %v262 = vpop.f32.mrf.mxu0
    %v263 = vadd.f32 0.0, %v262
    %v264 = vpop.f32.mrf.mxu0
    %v265 = vpop.f32.mrf.mxu0
    %v266 = vadd.f32 0.0, %v265
    %v267 = vpop.f32.mrf.mxu0
    %268 = vmatprep.mubr.bf16.mxu0 0
    %269 = vmatmul.mubr.bf16.gmra.mxu0 %v123
    %v270 = vpop.f32.mrf.mxu0
    %v271 = vadd.f32 0.0, %v270
    %v272 = vpop.f32.mrf.mxu0
    %v273 = vpop.f32.mrf.mxu0
    %v274 = vadd.f32 0.0, %v273
    %v275 = vpop.f32.mrf.mxu0
    %276 = vdwg.mxu0
    %v277 = vadd.f32 %v52, %v215
    %v278 = vadd.f32 %v53, %v218
    %v279 = vadd.f32 %v54, %v223
    %v280 = vadd.f32 %v55, %v226
    %v281 = vadd.f32 %v56, %v231
    %v282 = vadd.f32 %v57, %v234
    %v283 = vadd.f32 %v58, %v239
    %v284 = vadd.f32 %v59, %v242
    %v285 = vadd.f32 %v60, %v247
    %v286 = vadd.f32 %v61, %v250
    %v287 = vadd.f32 %v62, %v255
    %v288 = vadd.f32 %v63, %v258
    %v289 = vadd.f32 %v64, %v263
    %v290 = vadd.f32 %v65, %v266
    %v291 = vadd.f32 %v66, %v271
    %v292 = vadd.f32 %v67, %v274
    %vm293 = vcmask 261120
    %294 = vst.msk [vmem:[%s2] sm:$0xff] %vm293, %v277
    %295 = vst.msk [vmem:[%s2 + $0x8] sm:$0xff] %vm293, %v278
    %296 = vst.msk [vmem:[%s2 + $0x10] sm:$0xff] %vm293, %v279
    %297 = vst.msk [vmem:[%s2 + $0x18] sm:$0xff] %vm293, %v280
    %298 = vst.msk [vmem:[%s2 + $0x20] sm:$0xff] %vm293, %v281
    %299 = vst.msk [vmem:[%s2 + $0x28] sm:$0xff] %vm293, %v282
    %300 = vst.msk [vmem:[%s2 + $0x30] sm:$0xff] %vm293, %v283
    %301 = vst.msk [vmem:[%s2 + $0x38] sm:$0xff] %vm293, %v284
    %302 = vst.msk [vmem:[%s2 + $0x40] sm:$0xff] %vm293, %v285
    %303 = vst.msk [vmem:[%s2 + $0x48] sm:$0xff] %vm293, %v286
    %304 = vst.msk [vmem:[%s2 + $0x50] sm:$0xff] %vm293, %v287
    %305 = vst.msk [vmem:[%s2 + $0x58] sm:$0xff] %vm293, %v288
    %306 = vst.msk [vmem:[%s2 + $0x60] sm:$0xff] %vm293, %v289
    %307 = vst.msk [vmem:[%s2 + $0x68] sm:$0xff] %vm293, %v290
    %308 = vst.msk [vmem:[%s2 + $0x70] sm:$0xff] %vm293, %v291
    %309 = vst.msk [vmem:[%s2 + $0x78] sm:$0xff] %vm293, %v292
    // Predicated region
    $region14: #{lightgcn_forward.5} parent=1 // pred_check
      %p310 = pneg %p15
    $region15: #{lightgcn_forward.5} parent=1 // pred_check_branch
      %312 = sbr.rel (%p310) target = $region17
    $region16: #{lightgcn_forward.5} parent=1 // pred_region
      %v313 = vld [vmem:[%s2] sm:$0xff]
      %v314 = vld [vmem:[%s2 + $0x8] sm:$0xff]
      %v315 = vld [vmem:[%s2 + $0x10] sm:$0xff]
      %v316 = vld [vmem:[%s2 + $0x18] sm:$0xff]
      %v317 = vld [vmem:[%s2 + $0x20] sm:$0xff]
      %v318 = vld [vmem:[%s2 + $0x28] sm:$0xff]
      %v319 = vld [vmem:[%s2 + $0x30] sm:$0xff]
      %v320 = vld [vmem:[%s2 + $0x38] sm:$0xff]
      %v321 = vld [vmem:[%s2 + $0x40] sm:$0xff]
      %v322 = vld [vmem:[%s2 + $0x48] sm:$0xff]
      %v323 = vld [vmem:[%s2 + $0x50] sm:$0xff]
      %v324 = vld [vmem:[%s2 + $0x58] sm:$0xff]
      %v325 = vld [vmem:[%s2 + $0x60] sm:$0xff]
      %v326 = vld [vmem:[%s2 + $0x68] sm:$0xff]
      %v327 = vld [vmem:[%s2 + $0x70] sm:$0xff]
      %v328 = vld [vmem:[%s2 + $0x78] sm:$0xff]
      %v329 = vpack.c.bf16 %v314, %v313
      %v330 = vpack.c.bf16 %v316, %v315
      %v331 = vpack.c.bf16 %v318, %v317
      %v332 = vpack.c.bf16 %v320, %v319
      %v333 = vpack.c.bf16 %v322, %v321
      %v334 = vpack.c.bf16 %v324, %v323
      %v335 = vpack.c.bf16 %v326, %v325
      %v336 = vpack.c.bf16 %v328, %v327
      %v345 = vunpack.c.l.b16 %v329
      %v346 = vunpack.c.h.b16 %v329
      %v347 = vunpack.c.l.b16 %v330
      %v348 = vunpack.c.h.b16 %v330
      %v349 = vunpack.c.l.b16 %v331
      %v350 = vunpack.c.h.b16 %v331
      %v351 = vunpack.c.l.b16 %v332
      %v352 = vunpack.c.h.b16 %v332
      %v353 = vunpack.c.l.b16 %v333
      %v354 = vunpack.c.h.b16 %v333
      %v355 = vunpack.c.l.b16 %v334
      %v356 = vunpack.c.h.b16 %v334
      %v357 = vunpack.c.l.b16 %v335
      %v358 = vunpack.c.h.b16 %v335
      %v359 = vunpack.c.l.b16 %v336
      %v360 = vunpack.c.h.b16 %v336
      %v361 = vpack.c.b16 %v345, %v345
      %v362 = vpack.c.b16 %v346, %v346
      %v363 = vpack.c.b16 %v347, %v347
      %v364 = vpack.c.b16 %v348, %v348
      %v365 = vpack.c.b16 %v349, %v349
      %v366 = vpack.c.b16 %v350, %v350
      %v367 = vpack.c.b16 %v351, %v351
      %v368 = vpack.c.b16 %v352, %v352
      %v369 = vpack.c.b16 %v353, %v353
      %v370 = vpack.c.b16 %v354, %v354
      %v371 = vpack.c.b16 %v355, %v355
      %v372 = vpack.c.b16 %v356, %v356
      %v373 = vpack.c.b16 %v357, %v357
      %v374 = vpack.c.b16 %v358, %v358
      %v375 = vpack.c.b16 %v359, %v359
      %v376 = vpack.c.b16 %v360, %v360
      %vm393 = vcmask 257024
      %394 = vst.msk [vmem:[#allocation2] sm:$0xf] %vm393, %v361
      %395 = vst.msk [vmem:[#allocation2 + $0x4] sm:$0xf] %vm393, %v362
      %396 = vst.msk [vmem:[#allocation2 + $0x8] sm:$0xf] %vm393, %v363
      %397 = vst.msk [vmem:[#allocation2 + $0xc] sm:$0xf] %vm393, %v364
      %398 = vst.msk [vmem:[#allocation2 + $0x10] sm:$0xf] %vm393, %v365
      %399 = vst.msk [vmem:[#allocation2 + $0x14] sm:$0xf] %vm393, %v366
      %400 = vst.msk [vmem:[#allocation2 + $0x18] sm:$0xf] %vm393, %v367
      %401 = vst.msk [vmem:[#allocation2 + $0x1c] sm:$0xf] %vm393, %v368
      %402 = vst.msk [vmem:[#allocation2 + $0x20] sm:$0xf] %vm393, %v369
      %403 = vst.msk [vmem:[#allocation2 + $0x24] sm:$0xf] %vm393, %v370
      %404 = vst.msk [vmem:[#allocation2 + $0x28] sm:$0xf] %vm393, %v371
      %405 = vst.msk [vmem:[#allocation2 + $0x2c] sm:$0xf] %vm393, %v372
      %406 = vst.msk [vmem:[#allocation2 + $0x30] sm:$0xf] %vm393, %v373
      %407 = vst.msk [vmem:[#allocation2 + $0x34] sm:$0xf] %vm393, %v374
      %408 = vst.msk [vmem:[#allocation2 + $0x38] sm:$0xf] %vm393, %v375
      %409 = vst.msk [vmem:[#allocation2 + $0x3c] sm:$0xf] %vm393, %v376
    $region17: #{lightgcn_forward.5} parent=1 // pred_fallthru
      _
    // Predicated region
    $region18: #{lightgcn_forward.5} parent=1 // pred_check
      _
    $region19: #{lightgcn_forward.5} parent=1 // pred_check_branch
      %411 = sbr.rel (0) target = $region21
    $region20: #{lightgcn_forward.5} parent=1 // pred_region
      _
    $region21: #{lightgcn_forward.5} parent=1 // pred_fallthru
      _
    // Predicated region
    $region22: #{lightgcn_forward.5} parent=1 // pred_check
      _
    $region23: #{lightgcn_forward.5} parent=1 // pred_check_branch
      %413 = sbr.rel (0) target = $region25
    $region24: #{lightgcn_forward.5} parent=1 // pred_region
      %s415 = ssub.s32 1024, 1024
      %416 = vsyncadd [#allocation3], %s415
      %s417 = sshll.u32 [#allocation2], 4
      %s418 = int_to_ptr.vmem [resolvable:$true] %s417
      %423 = dma.vmem_to_hbm [thread:$0]  %s418, 1024, %s3, [#allocation3], 64, 64, 4
    $region25: #{lightgcn_forward.5} parent=1 // pred_fallthru
      _
    // Predicated region
    $region26: #{lightgcn_forward.5} parent=1 // pred_check
      _
    $region27: #{lightgcn_forward.5} parent=1 // pred_check_branch
      %425 = sbr.rel (0) target = $region29
    $region28: #{lightgcn_forward.5} parent=1 // pred_region
      _
    $region29: #{lightgcn_forward.5} parent=1 // pred_fallthru
      _
    // Predicated region
    $region30: #{lightgcn_forward.5} parent=1 // pred_check
      _
    $region31: #{lightgcn_forward.5} parent=1 // pred_check_branch
      %427 = sbr.rel (0) target = $region33
    $region32: #{lightgcn_forward.5} parent=1 // pred_region
      %428 = dma.done [#allocation3], 1024
    $region33: #{lightgcn_forward.5} parent=1 // pred_fallthru
      _
    %429 = vsyncpa [#allocation3], 1

// kernel: lightgcn_forward.3
$region0: #{lightgcn_forward.3}
  #allocation0 [shape = 'u32[]', space=smem, size = 0x4, offset = 0x4, fixed_abs, tag = 'smem constant byte address 0x4 - core index']
  #allocation1 [shape = 'u32[144,128]{1,0:T(1,128)}', space=vmem, size = 0x12000, scoped, tag = 'internal scratch']
  %s0 = inlined_call_operand.vmem [shape: bf16[128,128], index: 0, kind: input, shape index: {}]
  %s1 = inlined_call_operand.vmem [shape: bf16[128,32], index: 1, kind: input, shape index: {}]
  %s2 = inlined_call_operand.vmem [shape: f32[128,32], index: 2, kind: output, shape index: {0}]
  %s3 = inlined_call_operand.vmem [shape: bf16[128,32], index: 3, kind: output, shape index: {1}]
  %4 = xla_tuple %s2, %s3
  %s5 = sld [smem:[#allocation0]]
  $region34: #{lightgcn_forward.3} parent=0
    _
  %s7 = ssub.s32 1, %s5
  %s8 = scalar_select 0, %s7, %s5
  // Predicated region
  $region2: #{lightgcn_forward.3} parent=0 // pred_check
    _
  $region3: #{lightgcn_forward.3} parent=0 // pred_check_branch
    %10 = sbr.rel (0) target = $region5
  $region4: #{lightgcn_forward.3} parent=0 // pred_region
    _
  $region5: #{lightgcn_forward.3} parent=0 // pred_fallthru
    _
  // Predicated region
  $region6: #{lightgcn_forward.3} parent=0 // pred_check
    _
  $region7: #{lightgcn_forward.3} parent=0 // pred_check_branch
    %12 = sbr.rel (0) target = $region9
  $region8: #{lightgcn_forward.3} parent=0 // pred_region
    _
  $region9: #{lightgcn_forward.3} parent=0 // pred_fallthru
    _
  %p14 = scmp.eq.s32.totalorder 0, 0
  // Predicated region
  $region10: #{lightgcn_forward.3} parent=0 // pred_check
    %p15 = pneg %p14
  $region11: #{lightgcn_forward.3} parent=0 // pred_check_branch
    %17 = sbr.rel (%p15) target = $region13
  $region12: #{lightgcn_forward.3} parent=0 // pred_region
    %vm18 = vcmask 261120
    %19 = vst.msk [vmem:[%s2] sm:$0xff] %vm18, 0.0
    %20 = vst.msk [vmem:[%s2 + $0x8] sm:$0xff] %vm18, 0.0
    %21 = vst.msk [vmem:[%s2 + $0x10] sm:$0xff] %vm18, 0.0
    %22 = vst.msk [vmem:[%s2 + $0x18] sm:$0xff] %vm18, 0.0
    %23 = vst.msk [vmem:[%s2 + $0x20] sm:$0xff] %vm18, 0.0
    %24 = vst.msk [vmem:[%s2 + $0x28] sm:$0xff] %vm18, 0.0
    %25 = vst.msk [vmem:[%s2 + $0x30] sm:$0xff] %vm18, 0.0
    %26 = vst.msk [vmem:[%s2 + $0x38] sm:$0xff] %vm18, 0.0
    %27 = vst.msk [vmem:[%s2 + $0x40] sm:$0xff] %vm18, 0.0
    %28 = vst.msk [vmem:[%s2 + $0x48] sm:$0xff] %vm18, 0.0
    %29 = vst.msk [vmem:[%s2 + $0x50] sm:$0xff] %vm18, 0.0
    %30 = vst.msk [vmem:[%s2 + $0x58] sm:$0xff] %vm18, 0.0
    %31 = vst.msk [vmem:[%s2 + $0x60] sm:$0xff] %vm18, 0.0
    %32 = vst.msk [vmem:[%s2 + $0x68] sm:$0xff] %vm18, 0.0
    %33 = vst.msk [vmem:[%s2 + $0x70] sm:$0xff] %vm18, 0.0
    %34 = vst.msk [vmem:[%s2 + $0x78] sm:$0xff] %vm18, 0.0
  $region13: #{lightgcn_forward.3} parent=0 // pred_fallthru
    _
  %v35 = vld [vmem:[%s1] sm:$0xf]
  %v36 = vld [vmem:[%s1 + $0x4] sm:$0xf]
  %v37 = vld [vmem:[%s1 + $0x8] sm:$0xf]
  %v38 = vld [vmem:[%s1 + $0xc] sm:$0xf]
  %v39 = vld [vmem:[%s1 + $0x10] sm:$0xf]
  %v40 = vld [vmem:[%s1 + $0x14] sm:$0xf]
  %v41 = vld [vmem:[%s1 + $0x18] sm:$0xf]
  %v42 = vld [vmem:[%s1 + $0x1c] sm:$0xf]
  %v43 = vld [vmem:[%s1 + $0x20] sm:$0xf]
  %v44 = vld [vmem:[%s1 + $0x24] sm:$0xf]
  %v45 = vld [vmem:[%s1 + $0x28] sm:$0xf]
  %v46 = vld [vmem:[%s1 + $0x2c] sm:$0xf]
  %v47 = vld [vmem:[%s1 + $0x30] sm:$0xf]
  %v48 = vld [vmem:[%s1 + $0x34] sm:$0xf]
  %v49 = vld [vmem:[%s1 + $0x38] sm:$0xf]
  %v50 = vld [vmem:[%s1 + $0x3c] sm:$0xf]
  %v51 = vld [vmem:[%s2] sm:$0xff]
  %v52 = vld [vmem:[%s2 + $0x8] sm:$0xff]
  %v53 = vld [vmem:[%s2 + $0x10] sm:$0xff]
  %v54 = vld [vmem:[%s2 + $0x18] sm:$0xff]
  %v55 = vld [vmem:[%s2 + $0x20] sm:$0xff]
  %v56 = vld [vmem:[%s2 + $0x28] sm:$0xff]
  %v57 = vld [vmem:[%s2 + $0x30] sm:$0xff]
  %v58 = vld [vmem:[%s2 + $0x38] sm:$0xff]
  %v59 = vld [vmem:[%s2 + $0x40] sm:$0xff]
  %v60 = vld [vmem:[%s2 + $0x48] sm:$0xff]
  %v61 = vld [vmem:[%s2 + $0x50] sm:$0xff]
  %v62 = vld [vmem:[%s2 + $0x58] sm:$0xff]
  %v63 = vld [vmem:[%s2 + $0x60] sm:$0xff]
  %v64 = vld [vmem:[%s2 + $0x68] sm:$0xff]
  %v65 = vld [vmem:[%s2 + $0x70] sm:$0xff]
  %v66 = vld [vmem:[%s2 + $0x78] sm:$0xff]
  %v67 = vld [vmem:[%s0] sm:$0xf]
  %v68 = vld [vmem:[%s0 + $0x4] sm:$0xf]
  %v69 = vld [vmem:[%s0 + $0x8] sm:$0xf]
  %v70 = vld [vmem:[%s0 + $0xc] sm:$0xf]
  %v71 = vld [vmem:[%s0 + $0x10] sm:$0xf]
  %v72 = vld [vmem:[%s0 + $0x14] sm:$0xf]
  %v73 = vld [vmem:[%s0 + $0x18] sm:$0xf]
  %v74 = vld [vmem:[%s0 + $0x1c] sm:$0xf]
  %v75 = vld [vmem:[%s0 + $0x20] sm:$0xf]
  %v76 = vld [vmem:[%s0 + $0x24] sm:$0xf]
  %v77 = vld [vmem:[%s0 + $0x28] sm:$0xf]
  %v78 = vld [vmem:[%s0 + $0x2c] sm:$0xf]
  %v79 = vld [vmem:[%s0 + $0x30] sm:$0xf]
  %v80 = vld [vmem:[%s0 + $0x34] sm:$0xf]
  %v81 = vld [vmem:[%s0 + $0x38] sm:$0xf]
  %v82 = vld [vmem:[%s0 + $0x3c] sm:$0xf]
  %v99 = vunpack.c.l.b16 %v67
  %v100 = vunpack.c.l.b16 %v68
  %v101 = vunpack.c.l.b16 %v69
  %v102 = vunpack.c.l.b16 %v70
  %v103 = vunpack.c.l.b16 %v71
  %v104 = vunpack.c.l.b16 %v72
  %v105 = vunpack.c.l.b16 %v73
  %v106 = vunpack.c.l.b16 %v74
  %v107 = vunpack.c.l.b16 %v75
  %v108 = vunpack.c.l.b16 %v76
  %v109 = vunpack.c.l.b16 %v77
  %v110 = vunpack.c.l.b16 %v78
  %v111 = vunpack.c.l.b16 %v79
  %v112 = vunpack.c.l.b16 %v80
  %v113 = vunpack.c.l.b16 %v81
  %v114 = vunpack.c.l.b16 %v82
  %v115 = vpack.c.b16 %v100, %v99
  %v116 = vpack.c.b16 %v102, %v101
  %v117 = vpack.c.b16 %v104, %v103
  %v118 = vpack.c.b16 %v106, %v105
  %v119 = vpack.c.b16 %v108, %v107
  %v120 = vpack.c.b16 %v110, %v109
  %v121 = vpack.c.b16 %v112, %v111
  %v122 = vpack.c.b16 %v114, %v113
  %v147 = vunpack.c.l.b16 %v35
  %v148 = vunpack.c.l.b16 %v36
  %v149 = vunpack.c.l.b16 %v37
  %v150 = vunpack.c.l.b16 %v38
  %v151 = vunpack.c.l.b16 %v39
  %v152 = vunpack.c.l.b16 %v40
  %v153 = vunpack.c.l.b16 %v41
  %v154 = vunpack.c.l.b16 %v42
  %v155 = vunpack.c.l.b16 %v43
  %v156 = vunpack.c.l.b16 %v44
  %v157 = vunpack.c.l.b16 %v45
  %v158 = vunpack.c.l.b16 %v46
  %v159 = vunpack.c.l.b16 %v47
  %v160 = vunpack.c.l.b16 %v48
  %v161 = vunpack.c.l.b16 %v49
  %v162 = vunpack.c.l.b16 %v50
  %v163 = vpack.c.b16 %v148, %v147
  %v164 = vpack.c.b16 %v150, %v149
  %v165 = vpack.c.b16 %v152, %v151
  %v166 = vpack.c.b16 %v154, %v153
  %v167 = vpack.c.b16 %v156, %v155
  %v168 = vpack.c.b16 %v158, %v157
  %v169 = vpack.c.b16 %v160, %v159
  %v170 = vpack.c.b16 %v162, %v161
  %179 = vmatprep.subr.bf16.mxu0 0
  %180 = vmatpush1.bf16.msra.mxu0 %v170
  %181 = vmatprep.subr.bf16.mxu0 0
  %182 = vmatpush1.bf16.msra.mxu0 %v169
  %183 = vmatprep.subr.bf16.mxu0 0
  %184 = vmatpush1.bf16.msra.mxu0 %v168
  %185 = vmatprep.subr.bf16.mxu0 0
  %186 = vmatpush1.bf16.msra.mxu0 %v167
  %187 = vmatprep.subr.bf16.mxu0 0
  %188 = vmatpush1.bf16.msra.mxu0 %v166
  %189 = vmatprep.subr.bf16.mxu0 0
  %190 = vmatpush1.bf16.msra.mxu0 %v165
  %191 = vmatprep.subr.bf16.mxu0 0
  %192 = vmatpush1.bf16.msra.mxu0 %v164
  %193 = vmatprep.subr.bf16.mxu0 0
  %194 = vmatpush1.bf16.msra.mxu0 %v163
  %195 = vmatprep.subr.bf16.mxu0 0
  %196 = vmatpush2.bf16.msra.mxu0 0
  %197 = vmatprep.subr.bf16.mxu0 0
  %198 = vmatpush2.bf16.msra.mxu0 0
  %199 = vmatprep.subr.bf16.mxu0 0
  %200 = vmatpush2.bf16.msra.mxu0 0
  %201 = vmatprep.subr.bf16.mxu0 0
  %202 = vmatpush2.bf16.msra.mxu0 0
  %203 = vmatprep.subr.bf16.mxu0 0
  %204 = vmatpush2.bf16.msra.mxu0 0
  %205 = vmatprep.subr.bf16.mxu0 0
  %206 = vmatpush2.bf16.msra.mxu0 0
  %207 = vmatprep.subr.bf16.mxu0 0
  %208 = vmatpush2.bf16.msra.mxu0 0
  %209 = vmatprep.subr.bf16.mxu0 0
  %210 = vmatpush2.bf16.msra.mxu0 0
  %211 = vmatprep.mubr.bf16.mxu0 0
  %212 = vmatmul.mubr.bf16.gmra.mxu0 %v115
  %v213 = vpop.f32.mrf.mxu0
  %v214 = vadd.f32 0.0, %v213
  %v215 = vpop.f32.mrf.mxu0
  %v216 = vpop.f32.mrf.mxu0
  %v217 = vadd.f32 0.0, %v216
  %v218 = vpop.f32.mrf.mxu0
  %219 = vmatprep.mubr.bf16.mxu0 0
  %220 = vmatmul.mubr.bf16.gmra.mxu0 %v116
  %v221 = vpop.f32.mrf.mxu0
  %v222 = vadd.f32 0.0, %v221
  %v223 = vpop.f32.mrf.mxu0
  %v224 = vpop.f32.mrf.mxu0
  %v225 = vadd.f32 0.0, %v224
  %v226 = vpop.f32.mrf.mxu0
  %227 = vmatprep.mubr.bf16.mxu0 0
  %228 = vmatmul.mubr.bf16.gmra.mxu0 %v117
  %v229 = vpop.f32.mrf.mxu0
  %v230 = vadd.f32 0.0, %v229
  %v231 = vpop.f32.mrf.mxu0
  %v232 = vpop.f32.mrf.mxu0
  %v233 = vadd.f32 0.0, %v232
  %v234 = vpop.f32.mrf.mxu0
  %235 = vmatprep.mubr.bf16.mxu0 0
  %236 = vmatmul.mubr.bf16.gmra.mxu0 %v118
  %v237 = vpop.f32.mrf.mxu0
  %v238 = vadd.f32 0.0, %v237
  %v239 = vpop.f32.mrf.mxu0
  %v240 = vpop.f32.mrf.mxu0
  %v241 = vadd.f32 0.0, %v240
  %v242 = vpop.f32.mrf.mxu0
  %243 = vmatprep.mubr.bf16.mxu0 0
  %244 = vmatmul.mubr.bf16.gmra.mxu0 %v119
  %v245 = vpop.f32.mrf.mxu0
  %v246 = vadd.f32 0.0, %v245
  %v247 = vpop.f32.mrf.mxu0
  %v248 = vpop.f32.mrf.mxu0
  %v249 = vadd.f32 0.0, %v248
  %v250 = vpop.f32.mrf.mxu0
  %251 = vmatprep.mubr.bf16.mxu0 0
  %252 = vmatmul.mubr.bf16.gmra.mxu0 %v120
  %v253 = vpop.f32.mrf.mxu0
  %v254 = vadd.f32 0.0, %v253
  %v255 = vpop.f32.mrf.mxu0
  %v256 = vpop.f32.mrf.mxu0
  %v257 = vadd.f32 0.0, %v256
  %v258 = vpop.f32.mrf.mxu0
  %259 = vmatprep.mubr.bf16.mxu0 0
  %260 = vmatmul.mubr.bf16.gmra.mxu0 %v121
  %v261 = vpop.f32.mrf.mxu0
  %v262 = vadd.f32 0.0, %v261
  %v263 = vpop.f32.mrf.mxu0
  %v264 = vpop.f32.mrf.mxu0
  %v265 = vadd.f32 0.0, %v264
  %v266 = vpop.f32.mrf.mxu0
  %267 = vmatprep.mubr.bf16.mxu0 0
  %268 = vmatmul.mubr.bf16.gmra.mxu0 %v122
  %v269 = vpop.f32.mrf.mxu0
  %v270 = vadd.f32 0.0, %v269
  %v271 = vpop.f32.mrf.mxu0
  %v272 = vpop.f32.mrf.mxu0
  %v273 = vadd.f32 0.0, %v272
  %v274 = vpop.f32.mrf.mxu0
  %275 = vdwg.mxu0
  %v276 = vadd.f32 %v51, %v214
  %v277 = vadd.f32 %v52, %v217
  %v278 = vadd.f32 %v53, %v222
  %v279 = vadd.f32 %v54, %v225
  %v280 = vadd.f32 %v55, %v230
  %v281 = vadd.f32 %v56, %v233
  %v282 = vadd.f32 %v57, %v238
  %v283 = vadd.f32 %v58, %v241
  %v284 = vadd.f32 %v59, %v246
  %v285 = vadd.f32 %v60, %v249
  %v286 = vadd.f32 %v61, %v254
  %v287 = vadd.f32 %v62, %v257
  %v288 = vadd.f32 %v63, %v262
  %v289 = vadd.f32 %v64, %v265
  %v290 = vadd.f32 %v65, %v270
  %v291 = vadd.f32 %v66, %v273
  %vm292 = vcmask 261120
  %293 = vst.msk [vmem:[%s2] sm:$0xff] %vm292, %v276
  %294 = vst.msk [vmem:[%s2 + $0x8] sm:$0xff] %vm292, %v277
  %295 = vst.msk [vmem:[%s2 + $0x10] sm:$0xff] %vm292, %v278
  %296 = vst.msk [vmem:[%s2 + $0x18] sm:$0xff] %vm292, %v279
  %297 = vst.msk [vmem:[%s2 + $0x20] sm:$0xff] %vm292, %v280
  %298 = vst.msk [vmem:[%s2 + $0x28] sm:$0xff] %vm292, %v281
  %299 = vst.msk [vmem:[%s2 + $0x30] sm:$0xff] %vm292, %v282
  %300 = vst.msk [vmem:[%s2 + $0x38] sm:$0xff] %vm292, %v283
  %301 = vst.msk [vmem:[%s2 + $0x40] sm:$0xff] %vm292, %v284
  %302 = vst.msk [vmem:[%s2 + $0x48] sm:$0xff] %vm292, %v285
  %303 = vst.msk [vmem:[%s2 + $0x50] sm:$0xff] %vm292, %v286
  %304 = vst.msk [vmem:[%s2 + $0x58] sm:$0xff] %vm292, %v287
  %305 = vst.msk [vmem:[%s2 + $0x60] sm:$0xff] %vm292, %v288
  %306 = vst.msk [vmem:[%s2 + $0x68] sm:$0xff] %vm292, %v289
  %307 = vst.msk [vmem:[%s2 + $0x70] sm:$0xff] %vm292, %v290
  %308 = vst.msk [vmem:[%s2 + $0x78] sm:$0xff] %vm292, %v291
  // Predicated region
  $region14: #{lightgcn_forward.3} parent=0 // pred_check
    %p309 = pneg %p14
  $region15: #{lightgcn_forward.3} parent=0 // pred_check_branch
    %311 = sbr.rel (%p309) target = $region17
  $region16: #{lightgcn_forward.3} parent=0 // pred_region
    %v312 = vld [vmem:[%s2] sm:$0xff]
    %v313 = vld [vmem:[%s2 + $0x8] sm:$0xff]
    %v314 = vld [vmem:[%s2 + $0x10] sm:$0xff]
    %v315 = vld [vmem:[%s2 + $0x18] sm:$0xff]
    %v316 = vld [vmem:[%s2 + $0x20] sm:$0xff]
    %v317 = vld [vmem:[%s2 + $0x28] sm:$0xff]
    %v318 = vld [vmem:[%s2 + $0x30] sm:$0xff]
    %v319 = vld [vmem:[%s2 + $0x38] sm:$0xff]
    %v320 = vld [vmem:[%s2 + $0x40] sm:$0xff]
    %v321 = vld [vmem:[%s2 + $0x48] sm:$0xff]
    %v322 = vld [vmem:[%s2 + $0x50] sm:$0xff]
    %v323 = vld [vmem:[%s2 + $0x58] sm:$0xff]
    %v324 = vld [vmem:[%s2 + $0x60] sm:$0xff]
    %v325 = vld [vmem:[%s2 + $0x68] sm:$0xff]
    %v326 = vld [vmem:[%s2 + $0x70] sm:$0xff]
    %v327 = vld [vmem:[%s2 + $0x78] sm:$0xff]
    %v328 = vpack.c.bf16 %v313, %v312
    %v329 = vpack.c.bf16 %v315, %v314
    %v330 = vpack.c.bf16 %v317, %v316
    %v331 = vpack.c.bf16 %v319, %v318
    %v332 = vpack.c.bf16 %v321, %v320
    %v333 = vpack.c.bf16 %v323, %v322
    %v334 = vpack.c.bf16 %v325, %v324
    %v335 = vpack.c.bf16 %v327, %v326
    %v344 = vunpack.c.l.b16 %v328
    %v345 = vunpack.c.h.b16 %v328
    %v346 = vunpack.c.l.b16 %v329
    %v347 = vunpack.c.h.b16 %v329
    %v348 = vunpack.c.l.b16 %v330
    %v349 = vunpack.c.h.b16 %v330
    %v350 = vunpack.c.l.b16 %v331
    %v351 = vunpack.c.h.b16 %v331
    %v352 = vunpack.c.l.b16 %v332
    %v353 = vunpack.c.h.b16 %v332
    %v354 = vunpack.c.l.b16 %v333
    %v355 = vunpack.c.h.b16 %v333
    %v356 = vunpack.c.l.b16 %v334
    %v357 = vunpack.c.h.b16 %v334
    %v358 = vunpack.c.l.b16 %v335
    %v359 = vunpack.c.h.b16 %v335
    %v360 = vpack.c.b16 %v344, %v344
    %v361 = vpack.c.b16 %v345, %v345
    %v362 = vpack.c.b16 %v346, %v346
    %v363 = vpack.c.b16 %v347, %v347
    %v364 = vpack.c.b16 %v348, %v348
    %v365 = vpack.c.b16 %v349, %v349
    %v366 = vpack.c.b16 %v350, %v350
    %v367 = vpack.c.b16 %v351, %v351
    %v368 = vpack.c.b16 %v352, %v352
    %v369 = vpack.c.b16 %v353, %v353
    %v370 = vpack.c.b16 %v354, %v354
    %v371 = vpack.c.b16 %v355, %v355
    %v372 = vpack.c.b16 %v356, %v356
    %v373 = vpack.c.b16 %v357, %v357
    %v374 = vpack.c.b16 %v358, %v358
    %v375 = vpack.c.b16 %v359, %v359
    %vm392 = vcmask 257024
    %393 = vst.msk [vmem:[%s3] sm:$0xf] %vm392, %v360
    %394 = vst.msk [vmem:[%s3 + $0x4] sm:$0xf] %vm392, %v361
    %395 = vst.msk [vmem:[%s3 + $0x8] sm:$0xf] %vm392, %v362
    %396 = vst.msk [vmem:[%s3 + $0xc] sm:$0xf] %vm392, %v363
    %397 = vst.msk [vmem:[%s3 + $0x10] sm:$0xf] %vm392, %v364
    %398 = vst.msk [vmem:[%s3 + $0x14] sm:$0xf] %vm392, %v365
    %399 = vst.msk [vmem:[%s3 + $0x18] sm:$0xf] %vm392, %v366
    %400 = vst.msk [vmem:[%s3 + $0x1c] sm:$0xf] %vm392, %v367
    %401 = vst.msk [vmem:[%s3 + $0x20] sm:$0xf] %vm392, %v368
    %402 = vst.msk [vmem:[%s3 + $0x24] sm:$0xf] %vm392, %v369
    %403 = vst.msk [vmem:[%s3 + $0x28] sm:$0xf] %vm392, %v370
    %404 = vst.msk [vmem:[%s3 + $0x2c] sm:$0xf] %vm392, %v371
    %405 = vst.msk [vmem:[%s3 + $0x30] sm:$0xf] %vm392, %v372
    %406 = vst.msk [vmem:[%s3 + $0x34] sm:$0xf] %vm392, %v373
    %407 = vst.msk [vmem:[%s3 + $0x38] sm:$0xf] %vm392, %v374
    %408 = vst.msk [vmem:[%s3 + $0x3c] sm:$0xf] %vm392, %v375
  $region17: #{lightgcn_forward.3} parent=0 // pred_fallthru
    _
  // Predicated region
  $region18: #{lightgcn_forward.3} parent=0 // pred_check
    _
  $region19: #{lightgcn_forward.3} parent=0 // pred_check_branch
    %410 = sbr.rel (0) target = $region21
  $region20: #{lightgcn_forward.3} parent=0 // pred_region
    _
  $region21: #{lightgcn_forward.3} parent=0 // pred_fallthru
    _
  // Predicated region
  $region22: #{lightgcn_forward.3} parent=0 // pred_check
    _
  $region23: #{lightgcn_forward.3} parent=0 // pred_check_branch
    %412 = sbr.rel (0) target = $region25
  $region24: #{lightgcn_forward.3} parent=0 // pred_region
    _
  $region25: #{lightgcn_forward.3} parent=0 // pred_fallthru
    _
  // Predicated region
  $region26: #{lightgcn_forward.3} parent=0 // pred_check
    _
  $region27: #{lightgcn_forward.3} parent=0 // pred_check_branch
    %414 = sbr.rel (0) target = $region29
  $region28: #{lightgcn_forward.3} parent=0 // pred_region
    _
  $region29: #{lightgcn_forward.3} parent=0 // pred_fallthru
    _
  // Predicated region
  $region30: #{lightgcn_forward.3} parent=0 // pred_check
    _
  $region31: #{lightgcn_forward.3} parent=0 // pred_check_branch
    %416 = sbr.rel (0) target = $region33
  $region32: #{lightgcn_forward.3} parent=0 // pred_region
    _
  $region33: #{lightgcn_forward.3} parent=0 // pred_fallthru
    _

</llo_original>
